<compile_context>
chip_gen: v5e
topology: v5e:2x2
jax: 0.10.0
libtpu: 0.0.40
codegen_flags: <defaults>
</compile_context>

<pallas_src>
import numpy as np

import jax
import jax.numpy as jnp
from jax import lax
from jax.experimental import pallas as pl
from jax.experimental.pallas import tpu as pltpu

# ---- small, deterministic model config (stand-in for BERT hidden_size etc.) ----
V   = 64            # vocab size (len(tokenizer))
H   = 32            # hidden size
B   = 2             # batch
L   = 8             # sentence sequence length
S   = 5             # n_sense (glosses per example)
LG  = 8             # gloss sequence length
T   = 4             # target-word subtoken count
GRP = 8             # rows per packed group (= L = LG; target rows padded to GRP)

N_GLOSS = B * S * LG            # 80 gloss token rows
N_SENT  = B * L                 # 16 sentence token rows
N_TGT   = B * GRP               # 16 target rows
N_CTX   = N_GLOSS + N_SENT      # 96 rows through the encoder path
NG      = N_CTX + N_TGT         # 112 gather rows total
N_IDS   = NG + 8                # 120: + one 8-row group carrying the labels
BS      = B * S                 # 10 flat gloss groups
PPAD    = 16                    # pooled halves padded to 16 rows (sublane aligned)
OUT_R, OUT_C = 8, 128           # lane-dense output tile

# ---- packed f32 slab row offsets (weights + trace-time constants) ----
R_TOK   = 0                     # (V, H)  shared "bert" token embedding
R_WORD  = R_TOK + V             # (V, H)  self.embedding table
R_ENCW  = R_WORD + V            # (H, H)  encoder dense weight
R_ENCB  = R_ENCW + H            # (1, H)  encoder dense bias (8-row padded block)
R_CCTX  = R_ENCB + 8            # (2*PPAD, N_CTX) fused pool matrix, ctx columns
R_CTGT  = R_CCTX + 2 * PPAD     # (2*PPAD, N_TGT) fused pool matrix, target columns
R_HIT   = R_CTGT + 2 * PPAD     # (PPAD, 128) scatter: row k -> lane k % S
R_LEFT  = R_HIT + PPAD          # (OUT_R, PPAD) gather: out row r <- rows r*S..r*S+S
R_NEG   = R_LEFT + OUT_R        # (OUT_R, 128) 0 on valid (B,S) block, -1e30 elsewhere
R_SLOT  = R_NEG + OUT_R         # (OUT_R, 128) 1 at [B, 0] (loss slot)
R_VALID = R_SLOT + OUT_R        # (OUT_R, 128) col 0 = 1/B for rows < B
SLAB_ROWS = R_VALID + OUT_R     # 280 rows total (multiple of 8)


def _static_tables():
    """All data-independent matrices, built once in numpy at trace time."""
    c = np.zeros((2 * PPAD, NG), np.float32)
    for k in range(BS):                                   # gloss mean-pool rows
        c[k, k * LG:(k + 1) * LG] = 1.0 / LG
    for k in range(BS):                                   # (sent_rep + word_embed) rows
        b = k // S
        c[PPAD + k, N_GLOSS + b * L:N_GLOSS + b * L + L] = 1.0 / L
        c[PPAD + k, N_CTX + b * GRP:N_CTX + b * GRP + T] = 1.0 / T
    c_ctx, c_tgt = c[:, :N_CTX], c[:, N_CTX:]

    hit = np.zeros((PPAD, OUT_C), np.float32)             # row k -> lane (k % S)
    for k in range(BS):
        hit[k, k % S] = 1.0
    left = np.zeros((OUT_R, PPAD), np.float32)            # out row r <- rows r*S..+S
    for r in range(B):
        left[r, r * S:(r + 1) * S] = 1.0
    negpad = np.full((OUT_R, OUT_C), -1e30, np.float32)
    negpad[:B, :S] = 0.0
    slot = np.zeros((OUT_R, OUT_C), np.float32)
    slot[B, 0] = 1.0
    rvalid = np.zeros((OUT_R, OUT_C), np.float32)
    rvalid[:B, 0] = 1.0 / B
    return c_ctx, c_tgt, hit, left, negpad, slot, rvalid


_C_CTX, _C_TGT, _HIT, _LEFT, _NEGPAD, _SLOT, _RVALID = _static_tables()


def wsd_kernel(ids_ref, slab_ref, out_ref):
    f32 = jnp.float32
    ids = ids_ref[...]                                    # (N_IDS, 1) int32

    tok    = slab_ref[R_TOK:R_TOK + V, 0:H]               # (V, H)
    word   = slab_ref[R_WORD:R_WORD + V, 0:H]             # (V, H)
    enc_w  = slab_ref[R_ENCW:R_ENCW + H, 0:H]             # (H, H)
    enc_b  = slab_ref[R_ENCB:R_ENCB + 1, 0:H]             # (1, H)
    c_ctx  = slab_ref[R_CCTX:R_CCTX + 2 * PPAD, 0:N_CTX]  # (32, 96)
    c_tgt  = slab_ref[R_CTGT:R_CTGT + 2 * PPAD, 0:N_TGT]  # (32, 16)
    hit    = slab_ref[R_HIT:R_HIT + PPAD, :]              # (16, 128)
    left   = slab_ref[R_LEFT:R_LEFT + OUT_R, 0:PPAD]      # (8, 16)
    negpad = slab_ref[R_NEG:R_NEG + OUT_R, :]             # (8, 128)
    slot   = slab_ref[R_SLOT:R_SLOT + OUT_R, :]           # (8, 128)
    rvalid = slab_ref[R_VALID:R_VALID + OUT_R, 0:1]       # (8, 1)

    # TODO(synk): a pretrained BERT encoder has no clean Pallas equivalent; this
    # stand-in (embedding lookup -> masked dense+tanh -> unweighted mean pooling)
    # matches the pure-JAX reference, not the original HuggingFace weights.

    # --- one-hot gather for ALL token streams (masked rows carry sentinel -1 -> zero row)
    gid = ids[:NG]                                                      # (112, 1)
    vlane = lax.broadcasted_iota(jnp.int32, (NG, V), 1)
    oh = (vlane == gid).astype(f32)                                     # (112, 64)

    # Fused encoder table: (oh @ tok) @ enc_w == oh @ (tok @ enc_w)
    w_comb = jnp.dot(tok, enc_w, preferred_element_type=f32)            # (V, H)

    # Static sublane-aligned split (96 | 16): no per-row select, no wasted tanh.
    g_ctx = jnp.dot(oh[:N_CTX], w_comb, preferred_element_type=f32)     # (96, H)
    feats_ctx = jnp.tanh(g_ctx + enc_b)                                 # (96, H)
    g_tgt = jnp.dot(oh[N_CTX:], word, preferred_element_type=f32)       # (16, H)

    # Fused pooling: rows [0,16) = gloss_rep, rows [16,32) = sent_rep + word_embed.
    pooled = (jnp.dot(c_ctx, feats_ctx, preferred_element_type=f32)
              + jnp.dot(c_tgt, g_tgt, preferred_element_type=f32))      # (32, H)
    prod = pooled[:PPAD] * pooled[PPAD:]                                # (16, H)
    row_logits = jnp.sum(prod, axis=1, keepdims=True)                   # (16, 1)

    # Scatter row k -> (k // S, k % S) of the lane-dense (8, 128) tile.
    scatter = hit * row_logits                                          # (16, 128)
    out = jnp.dot(left, scatter, preferred_element_type=f32)            # (8, 128)

    # --- CrossEntropyLoss over the valid (B, S) block, folded into the slab ---
    lm = out + negpad                                                   # -1e30 pads
    mrow = jnp.max(lm, axis=1, keepdims=True)
    lse = jnp.log(jnp.sum(jnp.exp(lm - mrow), axis=1, keepdims=True)) + mrow
    lab = ids[NG:NG + OUT_R]                                            # (8, 1); pads = -1
    lane = lax.broadcasted_iota(jnp.int32, (OUT_R, OUT_C), 1)
    picked = jnp.sum(out * (lane == lab).astype(f32), axis=1, keepdims=True)
    loss = jnp.sum((lse - picked) * rvalid)                             # mean over B

    out_ref[...] = out + loss * slot


def _pad_lanes(x):
    x = jnp.asarray(x, jnp.float32)
    return jnp.pad(x, ((0, 0), (0, OUT_C - x.shape[1])))


@jax.jit
def wsd_forward(sent_ids, sent_mask, gloss_ids, gloss_mask, target_word, labels,
                tok_emb, enc_w, enc_b, word_emb):
    f32, i32 = jnp.float32, jnp.int32

    # --- ids: masked / padded positions get the out-of-vocab sentinel -1 ------
    gloss_m = jnp.where(gloss_mask != 0, gloss_ids.astype(i32), -1)
    sent_m  = jnp.where(sent_mask != 0, sent_ids.astype(i32), -1)
    tgt_pad = jnp.pad(target_word.astype(i32), ((0, 0), (0, GRP - T)),
                      constant_values=-1)
    lab_pad = jnp.full((OUT_R,), -1, i32).at[:B].set(labels.astype(i32))
    ids_all = jnp.concatenate([gloss_m.reshape(-1), sent_m.reshape(-1),
                               tgt_pad.reshape(-1), lab_pad]).reshape(N_IDS, 1)

    # --- one f32 slab: runtime weights + trace-time constant matrices ---------
    enc_b_blk = jnp.concatenate([enc_b.astype(f32), jnp.zeros((7, H), f32)], axis=0)
    slab = jnp.concatenate([
        _pad_lanes(tok_emb), _pad_lanes(word_emb), _pad_lanes(enc_w),
        _pad_lanes(enc_b_blk),
        _pad_lanes(_C_CTX), _pad_lanes(_C_TGT), _pad_lanes(_HIT),
        _pad_lanes(_LEFT), _pad_lanes(_NEGPAD), _pad_lanes(_SLOT),
        _pad_lanes(_RVALID),
    ], axis=0)                                              # (SLAB_ROWS, 128) f32
    # TODO(synk): on v6e/v7x the dot operands could be cast to bf16 (f32 accum)
    # for a faster MXU path; kept f32 so the 1e-4 check vs the f32 reference
    # holds and v5e avoids convert traffic.
    # TODO(synk): if this forward runs many times per step, add a leading
    # "parallel" grid axis over a macro-batch of problems so DMAs pipeline and
    # v7x's second TensorCore gets work; single-shot here, so kept gridless.

    vmem = pl.BlockSpec(memory_space=pltpu.MemorySpace.VMEM)
    tile = pl.pallas_call(
        wsd_kernel,
        out_shape=jax.ShapeDtypeStruct((OUT_R, OUT_C), jnp.float32),
        in_specs=[vmem, vmem],
        out_specs=vmem,
    )(ids_all, slab)
    return tile[B, 0], tile[:B, :S]


def wsd_reference(sent_ids, sent_mask, gloss_ids, gloss_mask, target_word, labels,
                  tok_emb, enc_w, enc_b, word_emb):
    def encode(ids, mask):
        tok = tok_emb[ids] * mask[..., None].astype(jnp.float32)
        h = jnp.tanh(tok @ enc_w + enc_b[0])
        return h.mean(axis=-2)
    word_embed = word_emb[target_word].mean(axis=1)
    sent_rep = encode(sent_ids, sent_mask) + word_embed
    gloss_rep = encode(gloss_ids, gloss_mask)
    logits = jnp.sum(sent_rep[:, None, :] * gloss_rep, axis=-1)
    lse = jax.nn.logsumexp(logits, axis=-1)
    nll = lse - jnp.take_along_axis(logits, labels[:, None], axis=-1)[:, 0]
    return jnp.mean(nll), logits


if __name__ == "__main__":
    key = jax.random.PRNGKey(0)
    ks = jax.random.split(key, 8)

    sent_ids   = jax.random.randint(ks[0], (B, L), 0, V, dtype=jnp.int32)
    sent_mask  = jnp.ones((B, L), dtype=jnp.int32).at[:, L - 2:].set(0)
    gloss_ids  = jax.random.randint(ks[1], (B, S, LG), 0, V, dtype=jnp.int32)
    gloss_mask = jnp.ones((B, S, LG), dtype=jnp.int32).at[:, :, LG - 3:].set(0)
    target_word = jax.random.randint(ks[2], (B, T), 0, V, dtype=jnp.int32)
    labels     = jax.random.randint(ks[3], (B,), 0, S, dtype=jnp.int32)

    tok_emb  = jax.random.normal(ks[4], (V, H), dtype=jnp.float32) * 0.1
    enc_w    = jax.random.normal(ks[5], (H, H), dtype=jnp.float32) * 0.1
    enc_b    = jax.random.normal(ks[6], (1, H), dtype=jnp.float32) * 0.1
    word_emb = jax.random.normal(ks[7], (V, H), dtype=jnp.float32) * 0.1
    # alpha parameter exists in the module but is unused in forward -> omitted.

    loss, logits = wsd_forward(sent_ids, sent_mask, gloss_ids, gloss_mask,
                               target_word, labels,
                               tok_emb, enc_w, enc_b, word_emb)
    jax.block_until_ready((loss, logits))

    ref_loss, ref_logits = wsd_reference(sent_ids, sent_mask, gloss_ids, gloss_mask,
                                         target_word, labels,
                                         tok_emb, enc_w, enc_b, word_emb)
    assert jnp.allclose(logits, ref_logits, rtol=1e-4, atol=1e-4)
    assert jnp.allclose(loss, ref_loss, rtol=1e-4, atol=1e-4)

    print("KERNEL_OK")
</pallas_src>

<mosaic_0001>
module attributes {stable_mosaic.version = 11 : i64} {
  func.func @wsd_kernel(%arg0: memref<120x1xi32, #tpu.memory_space<vmem>>, %arg1: memref<280x128xf32, #tpu.memory_space<vmem>>, %arg2: memref<8x128xf32, #tpu.memory_space<vmem>>) attributes {dimension_semantics = [], scalar_prefetch = 0 : i64, scratch_operands = 0 : i64, tpu.core_type = #tpu.core_type<tc>} {
    %c0 = arith.constant 0 : index
    %c0_0 = arith.constant 0 : index
    %0 = vector.load %arg0[%c0, %c0_0] : memref<120x1xi32, #tpu.memory_space<vmem>>, vector<120x1xi32>
    %c0_1 = arith.constant 0 : index
    %c0_2 = arith.constant 0 : index
    %1 = vector.load %arg1[%c0_1, %c0_2] : memref<280x128xf32, #tpu.memory_space<vmem>>, vector<64x32xf32>
    %c64 = arith.constant 64 : index
    %c0_3 = arith.constant 0 : index
    %2 = vector.load %arg1[%c64, %c0_3] : memref<280x128xf32, #tpu.memory_space<vmem>>, vector<64x32xf32>
    %c128 = arith.constant 128 : index
    %c0_4 = arith.constant 0 : index
    %3 = vector.load %arg1[%c128, %c0_4] : memref<280x128xf32, #tpu.memory_space<vmem>>, vector<32x32xf32>
    %c160 = arith.constant 160 : index
    %c0_5 = arith.constant 0 : index
    %4 = vector.load %arg1[%c160, %c0_5] : memref<280x128xf32, #tpu.memory_space<vmem>>, vector<1x32xf32>
    %c168 = arith.constant 168 : index
    %c0_6 = arith.constant 0 : index
    %5 = vector.load %arg1[%c168, %c0_6] : memref<280x128xf32, #tpu.memory_space<vmem>>, vector<32x96xf32>
    %c200 = arith.constant 200 : index
    %c0_7 = arith.constant 0 : index
    %6 = vector.load %arg1[%c200, %c0_7] : memref<280x128xf32, #tpu.memory_space<vmem>>, vector<32x16xf32>
    %c232 = arith.constant 232 : index
    %c0_8 = arith.constant 0 : index
    %7 = vector.load %arg1[%c232, %c0_8] : memref<280x128xf32, #tpu.memory_space<vmem>>, vector<16x128xf32>
    %c248 = arith.constant 248 : index
    %c0_9 = arith.constant 0 : index
    %8 = vector.load %arg1[%c248, %c0_9] : memref<280x128xf32, #tpu.memory_space<vmem>>, vector<8x16xf32>
    %c256 = arith.constant 256 : index
    %c0_10 = arith.constant 0 : index
    %9 = vector.load %arg1[%c256, %c0_10] : memref<280x128xf32, #tpu.memory_space<vmem>>, vector<8x128xf32>
    %c264 = arith.constant 264 : index
    %c0_11 = arith.constant 0 : index
    %10 = vector.load %arg1[%c264, %c0_11] : memref<280x128xf32, #tpu.memory_space<vmem>>, vector<8x128xf32>
    %c272 = arith.constant 272 : index
    %c0_12 = arith.constant 0 : index
    %11 = vector.load %arg1[%c272, %c0_12] : memref<280x128xf32, #tpu.memory_space<vmem>>, vector<8x1xf32>
    %12 = vector.extract_strided_slice %0 {offsets = [0, 0], sizes = [112, 1], strides = [1, 1]} : vector<120x1xi32> to vector<112x1xi32>
    %13 = tpu.iota {dimensions = array<i32: 1>} : vector<112x64xi32>
    %14 = vector.broadcast %12 : vector<112x1xi32> to vector<112x64xi32>
    %15 = arith.cmpi eq, %13, %14 : vector<112x64xi32>
    %16 = arith.extui %15 : vector<112x64xi1> to vector<112x64xi32>
    %17 = arith.sitofp %16 : vector<112x64xi32> to vector<112x64xf32>
    %cst = arith.constant dense<0.000000e+00> : vector<64x32xf32>
    %18 = tpu.matmul %1, %3, %cst {dimension_numbers = #tpu.dot_dimension_numbers<[1], [0], [0], [1], [0, 0, 1, 1], [], []>} : vector<64x32xf32>, vector<32x32xf32>, vector<64x32xf32> -> vector<64x32xf32>
    %19 = vector.extract_strided_slice %17 {offsets = [0, 0], sizes = [96, 64], strides = [1, 1]} : vector<112x64xf32> to vector<96x64xf32>
    %cst_13 = arith.constant dense<0.000000e+00> : vector<96x32xf32>
    %20 = tpu.matmul %19, %18, %cst_13 {dimension_numbers = #tpu.dot_dimension_numbers<[1], [0], [0], [1], [0, 0, 1, 1], [], []>} : vector<96x64xf32>, vector<64x32xf32>, vector<96x32xf32> -> vector<96x32xf32>
    %21 = vector.broadcast %4 : vector<1x32xf32> to vector<96x32xf32>
    %22 = arith.addf %20, %21 : vector<96x32xf32>
    %23 = math.tanh %22 : vector<96x32xf32>
    %24 = vector.extract_strided_slice %17 {offsets = [96, 0], sizes = [16, 64], strides = [1, 1]} : vector<112x64xf32> to vector<16x64xf32>
    %cst_14 = arith.constant dense<0.000000e+00> : vector<16x32xf32>
    %25 = tpu.matmul %24, %2, %cst_14 {dimension_numbers = #tpu.dot_dimension_numbers<[1], [0], [0], [1], [0, 0, 1, 1], [], []>} : vector<16x64xf32>, vector<64x32xf32>, vector<16x32xf32> -> vector<16x32xf32>
    %cst_15 = arith.constant dense<0.000000e+00> : vector<32x32xf32>
    %26 = tpu.matmul %5, %23, %cst_15 {dimension_numbers = #tpu.dot_dimension_numbers<[1], [0], [0], [1], [0, 0, 1, 1], [], []>} : vector<32x96xf32>, vector<96x32xf32>, vector<32x32xf32> -> vector<32x32xf32>
    %cst_16 = arith.constant dense<0.000000e+00> : vector<32x32xf32>
    %27 = tpu.matmul %6, %25, %cst_16 {dimension_numbers = #tpu.dot_dimension_numbers<[1], [0], [0], [1], [0, 0, 1, 1], [], []>} : vector<32x16xf32>, vector<16x32xf32>, vector<32x32xf32> -> vector<32x32xf32>
    %28 = arith.addf %26, %27 : vector<32x32xf32>
    %29 = vector.extract_strided_slice %28 {offsets = [0, 0], sizes = [16, 32], strides = [1, 1]} : vector<32x32xf32> to vector<16x32xf32>
    %30 = vector.extract_strided_slice %28 {offsets = [16, 0], sizes = [16, 32], strides = [1, 1]} : vector<32x32xf32> to vector<16x32xf32>
    %31 = arith.mulf %29, %30 : vector<16x32xf32>
    %cst_17 = arith.constant dense<0.000000e+00> : vector<16xf32>
    %32 = vector.multi_reduction <add>, %31, %cst_17 [1] : vector<16x32xf32> to vector<16xf32>
    %33 = vector.shape_cast %32 : vector<16xf32> to vector<16x1xf32>
    %34 = vector.broadcast %33 : vector<16x1xf32> to vector<16x128xf32>
    %35 = arith.mulf %7, %34 : vector<16x128xf32>
    %cst_18 = arith.constant dense<0.000000e+00> : vector<8x128xf32>
    %36 = tpu.matmul %8, %35, %cst_18 {dimension_numbers = #tpu.dot_dimension_numbers<[1], [0], [0], [1], [0, 0, 1, 1], [], []>} : vector<8x16xf32>, vector<16x128xf32>, vector<8x128xf32> -> vector<8x128xf32>
    %37 = arith.addf %36, %9 : vector<8x128xf32>
    %cst_19 = arith.constant dense<0xFF800000> : vector<8xf32>
    %38 = vector.multi_reduction <maximumf>, %37, %cst_19 [1] : vector<8x128xf32> to vector<8xf32>
    %39 = vector.shape_cast %38 : vector<8xf32> to vector<8x1xf32>
    %40 = vector.broadcast %39 : vector<8x1xf32> to vector<8x128xf32>
    %41 = arith.subf %37, %40 : vector<8x128xf32>
    %42 = math.exp %41 : vector<8x128xf32>
    %cst_20 = arith.constant dense<0.000000e+00> : vector<8xf32>
    %43 = vector.multi_reduction <add>, %42, %cst_20 [1] : vector<8x128xf32> to vector<8xf32>
    %44 = vector.shape_cast %43 : vector<8xf32> to vector<8x1xf32>
    %45 = math.log %44 : vector<8x1xf32>
    %46 = arith.addf %45, %39 : vector<8x1xf32>
    %47 = vector.extract_strided_slice %0 {offsets = [112, 0], sizes = [8, 1], strides = [1, 1]} : vector<120x1xi32> to vector<8x1xi32>
    %48 = tpu.iota {dimensions = array<i32: 1>} : vector<8x128xi32>
    %49 = vector.broadcast %47 : vector<8x1xi32> to vector<8x128xi32>
    %50 = arith.cmpi eq, %48, %49 : vector<8x128xi32>
    %51 = arith.extui %50 : vector<8x128xi1> to vector<8x128xi32>
    %52 = arith.sitofp %51 : vector<8x128xi32> to vector<8x128xf32>
    %53 = arith.mulf %36, %52 : vector<8x128xf32>
    %cst_21 = arith.constant dense<0.000000e+00> : vector<8xf32>
    %54 = vector.multi_reduction <add>, %53, %cst_21 [1] : vector<8x128xf32> to vector<8xf32>
    %55 = vector.shape_cast %54 : vector<8xf32> to vector<8x1xf32>
    %56 = arith.subf %46, %55 : vector<8x1xf32>
    %57 = arith.mulf %56, %11 : vector<8x1xf32>
    %58 = vector.shape_cast %57 : vector<8x1xf32> to vector<1x8x1xf32>
    %cst_22 = arith.constant dense<0.000000e+00> : vector<1xf32>
    %59 = vector.multi_reduction <add>, %58, %cst_22 [1, 2] : vector<1x8x1xf32> to vector<1xf32>
    %60 = vector.shape_cast %59 : vector<1xf32> to vector<1x1x1xf32>
    %61 = vector.extract %60[0, 0, 0] : f32 from vector<1x1x1xf32>
    %62 = vector.broadcast %61 : f32 to vector<8x128xf32>
    %63 = arith.mulf %62, %10 : vector<8x128xf32>
    %64 = arith.addf %36, %63 : vector<8x128xf32>
    %c0_23 = arith.constant 0 : index
    %c0_24 = arith.constant 0 : index
    %65 = vector.load %arg2[%c0_23, %c0_24] : memref<8x128xf32, #tpu.memory_space<vmem>>, vector<8x128xf32>
    tpu.vector_store %arg2[%c0_23, %c0_24], %64 {strides = array<i32>} : memref<8x128xf32, #tpu.memory_space<vmem>>, vector<8x128xf32>,
    return
  }
}

</mosaic_0001>

<llo_original>
// kernel: wsd_forward.1
$region0: #{wsd_forward.1}
  #allocation0 [shape = 'u32[]', space=smem, size = 0x4, offset = 0x4, fixed_abs, tag = 'smem constant byte address 0x4 - core index']
  #allocation1 [shape = 'u32[72,128]{1,0:T(1,128)}', space=vmem, size = 0x9000, scoped, tag = 'internal scratch']
  %s0 = inlined_call_operand.vmem [shape: s32[120,1], index: 0, kind: input, shape index: {}]
  %s1 = inlined_call_operand.vmem [shape: f32[280,128], index: 1, kind: input, shape index: {}]
  %s2 = inlined_call_operand.vmem [shape: f32[8,128], index: 2, kind: output, shape index: {}]
  %s3 = sld [smem:[#allocation0]]
  $region18: #{wsd_forward.1} parent=0
    _
  %s5 = ssub.s32 1, %s3
  %s6 = scalar_select 0, %s5, %s3
  // Predicated region
  $region2: #{wsd_forward.1} parent=0 // pred_check
    _
  $region3: #{wsd_forward.1} parent=0 // pred_check_branch
    %8 = sbr.rel (0) target = $region5
  $region4: #{wsd_forward.1} parent=0 // pred_region
    _
  $region5: #{wsd_forward.1} parent=0 // pred_fallthru
    _
  // Predicated region
  $region6: #{wsd_forward.1} parent=0 // pred_check
    _
  $region7: #{wsd_forward.1} parent=0 // pred_check_branch
    %10 = sbr.rel (0) target = $region9
  $region8: #{wsd_forward.1} parent=0 // pred_region
    _
  $region9: #{wsd_forward.1} parent=0 // pred_fallthru
    _
  %v11 = vld [vmem:[%s0] sm:$0xff]
  %v12 = vld [vmem:[%s0 + $0x8] sm:$0xff]
  %v13 = vld [vmem:[%s0 + $0x10] sm:$0xff]
  %v14 = vld [vmem:[%s0 + $0x18] sm:$0xff]
  %v15 = vld [vmem:[%s0 + $0x20] sm:$0xff]
  %v16 = vld [vmem:[%s0 + $0x28] sm:$0xff]
  %v17 = vld [vmem:[%s0 + $0x30] sm:$0xff]
  %v18 = vld [vmem:[%s0 + $0x38] sm:$0xff]
  %v19 = vld [vmem:[%s0 + $0x40] sm:$0xff]
  %v20 = vld [vmem:[%s0 + $0x48] sm:$0xff]
  %v21 = vld [vmem:[%s0 + $0x50] sm:$0xff]
  %v22 = vld [vmem:[%s0 + $0x58] sm:$0xff]
  %v23 = vld [vmem:[%s0 + $0x60] sm:$0xff]
  %v24 = vld [vmem:[%s0 + $0x68] sm:$0xff]
  %v25 = vld [vmem:[%s0 + $0x70] sm:$0xff]
  %v26 = vld [vmem:[%s1] sm:$0xff]
  %v27 = vld [vmem:[%s1 + $0x8] sm:$0xff]
  %v28 = vld [vmem:[%s1 + $0x10] sm:$0xff]
  %v29 = vld [vmem:[%s1 + $0x18] sm:$0xff]
  %v30 = vld [vmem:[%s1 + $0x20] sm:$0xff]
  %v31 = vld [vmem:[%s1 + $0x28] sm:$0xff]
  %v32 = vld [vmem:[%s1 + $0x30] sm:$0xff]
  %v33 = vld [vmem:[%s1 + $0x38] sm:$0xff]
  %v34 = vld [vmem:[%s1 + $0x40] sm:$0xff]
  %v35 = vld [vmem:[%s1 + $0x48] sm:$0xff]
  %v36 = vld [vmem:[%s1 + $0x50] sm:$0xff]
  %v37 = vld [vmem:[%s1 + $0x58] sm:$0xff]
  %v38 = vld [vmem:[%s1 + $0x60] sm:$0xff]
  %v39 = vld [vmem:[%s1 + $0x68] sm:$0xff]
  %v40 = vld [vmem:[%s1 + $0x70] sm:$0xff]
  %v41 = vld [vmem:[%s1 + $0x78] sm:$0xff]
  %v42 = vld [vmem:[%s1 + $0x80] sm:$0xff]
  %v43 = vld [vmem:[%s1 + $0x88] sm:$0xff]
  %v44 = vld [vmem:[%s1 + $0x90] sm:$0xff]
  %v45 = vld [vmem:[%s1 + $0x98] sm:$0xff]
  %v46 = vld [vmem:[%s1 + $0xa0] sm:$0x1]
  %v47 = vld [vmem:[%s1 + $0xa8] sm:$0xff]
  %v48 = vld [vmem:[%s1 + $0xb0] sm:$0xff]
  %v49 = vld [vmem:[%s1 + $0xb8] sm:$0xff]
  %v50 = vld [vmem:[%s1 + $0xc0] sm:$0xff]
  %v51 = vld [vmem:[%s1 + $0xc8] sm:$0xff]
  %v52 = vld [vmem:[%s1 + $0xd0] sm:$0xff]
  %v53 = vld [vmem:[%s1 + $0xd8] sm:$0xff]
  %v54 = vld [vmem:[%s1 + $0xe0] sm:$0xff]
  %v55 = vld [vmem:[%s1 + $0xe8] sm:$0xff]
  %v56 = vld [vmem:[%s1 + $0xf0] sm:$0xff]
  %v57 = vld [vmem:[%s1 + $0xf8] sm:$0xff]
  %v58 = vld [vmem:[%s1 + $0x100] sm:$0xff]
  %v59 = vld [vmem:[%s1 + $0x108] sm:$0xff]
  %v60 = vld [vmem:[%s1 + $0x110] sm:$0xff]
  %v61 = vlaneseq
  %v62 = vand.u32 %v61, 127
  %63 = vset.pattern.permute.xlu0 0
  %64 = vperm.xlu0 %63, %v11
  %v65 = vpop.permute.xlu0 %64
  %66 = vset.pattern.permute.xlu0 0
  %67 = vperm.xlu0 %66, %v12
  %v68 = vpop.permute.xlu0 %67
  %69 = vset.pattern.permute.xlu0 0
  %70 = vperm.xlu0 %69, %v13
  %v71 = vpop.permute.xlu0 %70
  %72 = vset.pattern.permute.xlu0 0
  %73 = vperm.xlu0 %72, %v14
  %v74 = vpop.permute.xlu0 %73
  %75 = vset.pattern.permute.xlu0 0
  %76 = vperm.xlu0 %75, %v15
  %v77 = vpop.permute.xlu0 %76
  %78 = vset.pattern.permute.xlu0 0
  %79 = vperm.xlu0 %78, %v16
  %v80 = vpop.permute.xlu0 %79
  %81 = vset.pattern.permute.xlu0 0
  %82 = vperm.xlu0 %81, %v17
  %v83 = vpop.permute.xlu0 %82
  %84 = vset.pattern.permute.xlu0 0
  %85 = vperm.xlu0 %84, %v18
  %v86 = vpop.permute.xlu0 %85
  %87 = vset.pattern.permute.xlu0 0
  %88 = vperm.xlu0 %87, %v19
  %v89 = vpop.permute.xlu0 %88
  %90 = vset.pattern.permute.xlu0 0
  %91 = vperm.xlu0 %90, %v20
  %v92 = vpop.permute.xlu0 %91
  %93 = vset.pattern.permute.xlu0 0
  %94 = vperm.xlu0 %93, %v21
  %v95 = vpop.permute.xlu0 %94
  %96 = vset.pattern.permute.xlu0 0
  %97 = vperm.xlu0 %96, %v22
  %v98 = vpop.permute.xlu0 %97
  %99 = vset.pattern.permute.xlu0 0
  %100 = vperm.xlu0 %99, %v23
  %v101 = vpop.permute.xlu0 %100
  %102 = vset.pattern.permute.xlu0 0
  %103 = vperm.xlu0 %102, %v24
  %v104 = vpop.permute.xlu0 %103
  %vm105 = vcmp.eq.s32.totalorder %v62, %v65
  %vm106 = vcmp.eq.s32.totalorder %v62, %v68
  %vm107 = vcmp.eq.s32.totalorder %v62, %v71
  %vm108 = vcmp.eq.s32.totalorder %v62, %v74
  %vm109 = vcmp.eq.s32.totalorder %v62, %v77
  %vm110 = vcmp.eq.s32.totalorder %v62, %v80
  %vm111 = vcmp.eq.s32.totalorder %v62, %v83
  %vm112 = vcmp.eq.s32.totalorder %v62, %v86
  %vm113 = vcmp.eq.s32.totalorder %v62, %v89
  %vm114 = vcmp.eq.s32.totalorder %v62, %v92
  %vm115 = vcmp.eq.s32.totalorder %v62, %v95
  %vm116 = vcmp.eq.s32.totalorder %v62, %v98
  %vm117 = vcmp.eq.s32.totalorder %v62, %v101
  %vm118 = vcmp.eq.s32.totalorder %v62, %v104
  %v119 = vsel %vm105, 1, 0
  %v120 = vsel %vm106, 1, 0
  %v121 = vsel %vm107, 1, 0
  %v122 = vsel %vm108, 1, 0
  %v123 = vsel %vm109, 1, 0
  %v124 = vsel %vm110, 1, 0
  %v125 = vsel %vm111, 1, 0
  %v126 = vsel %vm112, 1, 0
  %v127 = vsel %vm113, 1, 0
  %v128 = vsel %vm114, 1, 0
  %v129 = vsel %vm115, 1, 0
  %v130 = vsel %vm116, 1, 0
  %v131 = vsel %vm117, 1, 0
  %v132 = vsel %vm118, 1, 0
  %v133 = vcvt.s32.f32 %v119
  %v134 = vcvt.s32.f32 %v120
  %v135 = vcvt.s32.f32 %v121
  %v136 = vcvt.s32.f32 %v122
  %v137 = vcvt.s32.f32 %v123
  %v138 = vcvt.s32.f32 %v124
  %v139 = vcvt.s32.f32 %v125
  %v140 = vcvt.s32.f32 %v126
  %v141 = vcvt.s32.f32 %v127
  %v142 = vcvt.s32.f32 %v128
  %v143 = vcvt.s32.f32 %v129
  %v144 = vcvt.s32.f32 %v130
  %v145 = vcvt.s32.f32 %v131
  %v146 = vcvt.s32.f32 %v132
  %vm147 = vcmask 261120
  %v149 = vsel %vm147, %v26, 0
  %v152 = vsel %vm147, %v27, 0
  %v155 = vsel %vm147, %v28, 0
  %v158 = vsel %vm147, %v29, 0
  %v161 = vsel %vm147, %v30, 0
  %v164 = vsel %vm147, %v31, 0
  %v167 = vsel %vm147, %v32, 0
  %v170 = vsel %vm147, %v33, 0
  %172 = vmatpush.msra.mxu0 0.0
  %173 = vmatpush.msra.mxu0 0.0
  %174 = vmatpush.msra.mxu0 0.0
  %175 = vmatpush.msra.mxu0 0.0
  %176 = vmatpush.msra.mxu0 0.0
  %177 = vmatpush.msra.mxu0 0.0
  %178 = vmatpush.msra.mxu0 0.0
  %179 = vmatpush.msra.mxu0 0.0
  %180 = vmatpush.msra.mxu0 0.0
  %181 = vmatpush.msra.mxu0 0.0
  %182 = vmatpush.msra.mxu0 0.0
  %183 = vmatpush.msra.mxu0 0.0
  %184 = vmatpush.msra.mxu0 %v45
  %185 = vmatpush.msra.mxu0 %v44
  %186 = vmatpush.msra.mxu0 %v43
  %187 = vmatpush.msra.mxu0 %v42
  %188 = vmatmul.f32.gmra.mxu0 %v149
  %v189 = vpop.f32.mrf.mxu0
  %v190 = vadd.f32 0.0, %v189
  %191 = vmatmul.f32.gmra.mxu0 %v152
  %v192 = vpop.f32.mrf.mxu0
  %v193 = vadd.f32 0.0, %v192
  %194 = vmatmul.f32.gmra.mxu0 %v155
  %v195 = vpop.f32.mrf.mxu0
  %v196 = vadd.f32 0.0, %v195
  %197 = vmatmul.f32.gmra.mxu0 %v158
  %v198 = vpop.f32.mrf.mxu0
  %v199 = vadd.f32 0.0, %v198
  %200 = vmatmul.f32.gmra.mxu0 %v161
  %v201 = vpop.f32.mrf.mxu0
  %v202 = vadd.f32 0.0, %v201
  %203 = vmatmul.f32.gmra.mxu0 %v164
  %v204 = vpop.f32.mrf.mxu0
  %v205 = vadd.f32 0.0, %v204
  %206 = vmatmul.f32.gmra.mxu0 %v167
  %v207 = vpop.f32.mrf.mxu0
  %v208 = vadd.f32 0.0, %v207
  %209 = vmatmul.f32.gmra.mxu0 %v170
  %v210 = vpop.f32.mrf.mxu0
  %v211 = vadd.f32 0.0, %v210
  %212 = vdwg.mxu0
  %v213 = vperm.slane %v46, 0
  %vm214 = vcmask 523264
  %v216 = vsel %vm214, %v133, 0
  %v219 = vsel %vm214, %v134, 0
  %v222 = vsel %vm214, %v135, 0
  %v225 = vsel %vm214, %v136, 0
  %v228 = vsel %vm214, %v137, 0
  %v231 = vsel %vm214, %v138, 0
  %v234 = vsel %vm214, %v139, 0
  %v237 = vsel %vm214, %v140, 0
  %v240 = vsel %vm214, %v141, 0
  %v243 = vsel %vm214, %v142, 0
  %v246 = vsel %vm214, %v143, 0
  %v249 = vsel %vm214, %v144, 0
  %251 = vmatpush.msra.mxu0 0.0
  %252 = vmatpush.msra.mxu0 0.0
  %253 = vmatpush.msra.mxu0 0.0
  %254 = vmatpush.msra.mxu0 0.0
  %255 = vmatpush.msra.mxu0 0.0
  %256 = vmatpush.msra.mxu0 0.0
  %257 = vmatpush.msra.mxu0 0.0
  %258 = vmatpush.msra.mxu0 0.0
  %259 = vmatpush.msra.mxu0 %v211
  %260 = vmatpush.msra.mxu0 %v208
  %261 = vmatpush.msra.mxu0 %v205
  %262 = vmatpush.msra.mxu0 %v202
  %263 = vmatpush.msra.mxu0 %v199
  %264 = vmatpush.msra.mxu0 %v196
  %265 = vmatpush.msra.mxu0 %v193
  %266 = vmatpush.msra.mxu0 %v190
  %267 = vmatmul.f32.gmra.mxu0 %v216
  %v268 = vpop.f32.mrf.mxu0
  %v269 = vadd.f32 %v213, %v268
  %270 = vmatmul.f32.gmra.mxu0 %v219
  %v271 = vpop.f32.mrf.mxu0
  %v272 = vadd.f32 %v213, %v271
  %273 = vmatmul.f32.gmra.mxu0 %v222
  %v274 = vpop.f32.mrf.mxu0
  %v275 = vadd.f32 %v213, %v274
  %276 = vmatmul.f32.gmra.mxu0 %v225
  %v277 = vpop.f32.mrf.mxu0
  %v278 = vadd.f32 %v213, %v277
  %279 = vmatmul.f32.gmra.mxu0 %v228
  %v280 = vpop.f32.mrf.mxu0
  %v281 = vadd.f32 %v213, %v280
  %282 = vmatmul.f32.gmra.mxu0 %v231
  %v283 = vpop.f32.mrf.mxu0
  %v284 = vadd.f32 %v213, %v283
  %285 = vmatmul.f32.gmra.mxu0 %v234
  %v286 = vpop.f32.mrf.mxu0
  %v287 = vadd.f32 %v213, %v286
  %288 = vmatmul.f32.gmra.mxu0 %v237
  %v289 = vpop.f32.mrf.mxu0
  %v290 = vadd.f32 %v213, %v289
  %291 = vmatmul.f32.gmra.mxu0 %v240
  %v292 = vpop.f32.mrf.mxu0
  %v293 = vadd.f32 %v213, %v292
  %294 = vmatmul.f32.gmra.mxu0 %v243
  %v295 = vpop.f32.mrf.mxu0
  %v296 = vadd.f32 %v213, %v295
  %297 = vmatmul.f32.gmra.mxu0 %v246
  %v298 = vpop.f32.mrf.mxu0
  %v299 = vadd.f32 %v213, %v298
  %300 = vmatmul.f32.gmra.mxu0 %v249
  %v301 = vpop.f32.mrf.mxu0
  %v302 = vadd.f32 %v213, %v301
  %303 = vdwg.mxu0
  %v304 = vtanh.pop %v269
  %v305 = vtanh.pop %v272
  %v306 = vtanh.pop %v275
  %v307 = vtanh.pop %v278
  %v308 = vtanh.pop %v281
  %v309 = vtanh.pop %v284
  %v310 = vtanh.pop %v287
  %v311 = vtanh.pop %v290
  %v312 = vtanh.pop %v293
  %v313 = vtanh.pop %v296
  %v314 = vtanh.pop %v299
  %v315 = vtanh.pop %v302
  %v317 = vsel %vm214, %v145, 0
  %v320 = vsel %vm214, %v146, 0
  %322 = vmatpush.msra.mxu0 0.0
  %323 = vmatpush.msra.mxu0 0.0
  %324 = vmatpush.msra.mxu0 0.0
  %325 = vmatpush.msra.mxu0 0.0
  %326 = vmatpush.msra.mxu0 0.0
  %327 = vmatpush.msra.mxu0 0.0
  %328 = vmatpush.msra.mxu0 0.0
  %329 = vmatpush.msra.mxu0 0.0
  %330 = vmatpush.msra.mxu0 %v41
  %331 = vmatpush.msra.mxu0 %v40
  %332 = vmatpush.msra.mxu0 %v39
  %333 = vmatpush.msra.mxu0 %v38
  %334 = vmatpush.msra.mxu0 %v37
  %335 = vmatpush.msra.mxu0 %v36
  %336 = vmatpush.msra.mxu0 %v35
  %337 = vmatpush.msra.mxu0 %v34
  %338 = vmatmul.f32.gmra.mxu0 %v317
  %v339 = vpop.f32.mrf.mxu0
  %v340 = vadd.f32 0.0, %v339
  %341 = vmatmul.f32.gmra.mxu0 %v320
  %v342 = vpop.f32.mrf.mxu0
  %v343 = vadd.f32 0.0, %v342
  %344 = vdwg.mxu0
  %vm345 = vcmask 130048
  %v347 = vsel %vm345, %v51, 0
  %v350 = vsel %vm345, %v52, 0
  %v353 = vsel %vm345, %v53, 0
  %v356 = vsel %vm345, %v54, 0
  %358 = vmatpush.msra.mxu0 0.0
  %359 = vmatpush.msra.mxu0 0.0
  %360 = vmatpush.msra.mxu0 0.0
  %361 = vmatpush.msra.mxu0 0.0
  %362 = vmatpush.msra.mxu0 0.0
  %363 = vmatpush.msra.mxu0 0.0
  %364 = vmatpush.msra.mxu0 0.0
  %365 = vmatpush.msra.mxu0 0.0
  %366 = vmatpush.msra.mxu0 0.0
  %367 = vmatpush.msra.mxu0 0.0
  %368 = vmatpush.msra.mxu0 0.0
  %369 = vmatpush.msra.mxu0 0.0
  %370 = vmatpush.msra.mxu0 0.0
  %371 = vmatpush.msra.mxu0 0.0
  %372 = vmatpush.msra.mxu0 %v343
  %373 = vmatpush.msra.mxu0 %v340
  %374 = vmatmul.f32.gmra.mxu0 %v347
  %v375 = vpop.f32.mrf.mxu0
  %v376 = vadd.f32 0.0, %v375
  %377 = vmatmul.f32.gmra.mxu0 %v350
  %v378 = vpop.f32.mrf.mxu0
  %v379 = vadd.f32 0.0, %v378
  %380 = vmatmul.f32.gmra.mxu0 %v353
  %v381 = vpop.f32.mrf.mxu0
  %v382 = vadd.f32 0.0, %v381
  %383 = vmatmul.f32.gmra.mxu0 %v356
  %v384 = vpop.f32.mrf.mxu0
  %v385 = vadd.f32 0.0, %v384
  %386 = vdwg.mxu0
  %vm387 = vcmask 785408
  %v389 = vsel %vm387, %v47, 0
  %v392 = vsel %vm387, %v48, 0
  %v395 = vsel %vm387, %v49, 0
  %v398 = vsel %vm387, %v50, 0
  %400 = vmatpush.msra.mxu0 0.0
  %401 = vmatpush.msra.mxu0 0.0
  %402 = vmatpush.msra.mxu0 0.0
  %403 = vmatpush.msra.mxu0 0.0
  %404 = vmatpush.msra.mxu0 %v315
  %405 = vmatpush.msra.mxu0 %v314
  %406 = vmatpush.msra.mxu0 %v313
  %407 = vmatpush.msra.mxu0 %v312
  %408 = vmatpush.msra.mxu0 %v311
  %409 = vmatpush.msra.mxu0 %v310
  %410 = vmatpush.msra.mxu0 %v309
  %411 = vmatpush.msra.mxu0 %v308
  %412 = vmatpush.msra.mxu0 %v307
  %413 = vmatpush.msra.mxu0 %v306
  %414 = vmatpush.msra.mxu0 %v305
  %415 = vmatpush.msra.mxu0 %v304
  %416 = vmatmul.f32.gmra.mxu0 %v389
  %v417 = vpop.f32.mrf.mxu0
  %v418 = vadd.f32 %v376, %v417
  %419 = vmatmul.f32.gmra.mxu0 %v392
  %v420 = vpop.f32.mrf.mxu0
  %v421 = vadd.f32 %v379, %v420
  %422 = vmatmul.f32.gmra.mxu0 %v395
  %v423 = vpop.f32.mrf.mxu0
  %v424 = vadd.f32 %v382, %v423
  %425 = vmatmul.f32.gmra.mxu0 %v398
  %v426 = vpop.f32.mrf.mxu0
  %v427 = vadd.f32 %v385, %v426
  %428 = vdwg.mxu0
  %v429 = vmul.f32 %v418, %v424
  %v430 = vmul.f32 %v421, %v427
  %v431 = vsel %vm147, %v429, 0.0
  %432 = vadd.xlane.f32.xlu0 %v431
  %v433 = vpop.xlane.xlu0 %432
  %v434 = vsel %vm147, %v430, 0.0
  %435 = vadd.xlane.f32.xlu0 %v434
  %v436 = vpop.xlane.xlu0 %435
  %v437 = vmul.f32 %v55, %v433
  %v438 = vmul.f32 %v56, %v436
  %v440 = vsel %vm345, %v57, 0
  %442 = vmatpush.msra.mxu0 0.0
  %443 = vmatpush.msra.mxu0 0.0
  %444 = vmatpush.msra.mxu0 0.0
  %445 = vmatpush.msra.mxu0 0.0
  %446 = vmatpush.msra.mxu0 0.0
  %447 = vmatpush.msra.mxu0 0.0
  %448 = vmatpush.msra.mxu0 0.0
  %449 = vmatpush.msra.mxu0 0.0
  %450 = vmatpush.msra.mxu0 0.0
  %451 = vmatpush.msra.mxu0 0.0
  %452 = vmatpush.msra.mxu0 0.0
  %453 = vmatpush.msra.mxu0 0.0
  %454 = vmatpush.msra.mxu0 0.0
  %455 = vmatpush.msra.mxu0 0.0
  %456 = vmatpush.msra.mxu0 %v438
  %457 = vmatpush.msra.mxu0 %v437
  %458 = vmatmul.f32.gmra.mxu0 %v440
  %v459 = vpop.f32.mrf.mxu0
  %v460 = vadd.f32 0.0, %v459
  %461 = vdwg.mxu0
  %v462 = vadd.f32 %v460, %v58
  %463 = vmax.xlane.f32.xlu0 %v462
  %v464 = vpop.xlane.xlu0 %463
  %v465 = vsub.f32 %v462, %v464
  %v466 = vmul.f32 %v465, 1.442695
  %v467 = vpow.pop %v466
  %468 = vadd.xlane.f32.xlu0 %v467
  %v469 = vpop.xlane.xlu0 %468
  %v470 = vlog2.pop %v469
  %v471 = vmul.f32 %v470, 0.6931472
  %v472 = vadd.f32 %v471, %v464
  %473 = vset.pattern.permute.xlu0 0
  %474 = vperm.xlu0 %473, %v25
  %v475 = vpop.permute.xlu0 %474
  %vm476 = vcmp.eq.s32.totalorder %v62, %v475
  %v477 = vsel %vm476, 1, 0
  %v478 = vcvt.s32.f32 %v477
  %v479 = vmul.f32 %v460, %v478
  %480 = vadd.xlane.f32.xlu0 %v479
  %v481 = vpop.xlane.xlu0 %480
  %v482 = vsub.f32 %v472, %v481
  %v483 = vmul.f32 %v482, %v60
  %vm484 = vcmask 7168
  %v485 = vsel %vm484, %v483, 0.0
  %486 = vadd.xlane.f32.xlu0 %v485
  %v487 = vpop.xlane.xlu0 %486
  %v488 = vrot.slane %v487, 4
  %v489 = vadd.f32 %v487, %v488
  %v490 = vrot.slane %v489, 2
  %v491 = vadd.f32 %v489, %v490
  %v492 = vrot.slane %v491, 1
  %v493 = vadd.f32 %v491, %v492
  %s494 = vtos %v493
  %v495 = vstv %s494
  %v496 = vmul.f32 %v495, %v59
  %v497 = vadd.f32 %v460, %v496
  %498 = vst [vmem:[%s2] sm:$0xff] %v497
  // Predicated region
  $region10: #{wsd_forward.1} parent=0 // pred_check
    _
  $region11: #{wsd_forward.1} parent=0 // pred_check_branch
    %500 = sbr.rel (0) target = $region13
  $region12: #{wsd_forward.1} parent=0 // pred_region
    _
  $region13: #{wsd_forward.1} parent=0 // pred_fallthru
    _
  // Predicated region
  $region14: #{wsd_forward.1} parent=0 // pred_check
    _
  $region15: #{wsd_forward.1} parent=0 // pred_check_branch
    %502 = sbr.rel (0) target = $region17
  $region16: #{wsd_forward.1} parent=0 // pred_region
    _
  $region17: #{wsd_forward.1} parent=0 // pred_fallthru
    _

</llo_original>
